<compile_context>
chip_gen: v7x
topology: tpu7x:2x2x1
jax: 0.10.0
libtpu: 0.0.40
codegen_flags: <defaults>
</compile_context>

<pallas_src>
import numpy as np
import jax
import jax.numpy as jnp
from jax.experimental import pallas as pl
from jax.experimental.pallas import tpu as pltpu

# ----------------------- module configuration (small) -----------------------
IMG_SIZE = 16
PATCH_SIZE = (2, 4)              # patch_size[0] < patch_size[1]
NUM_CHANNELS = 8
PROJECTION_DIM = 128             # ps = sqrt(128 // 8) = 4
KERNEL_CONV = 3

SQ = IMG_SIZE // PATCH_SIZE[0]            # sq_patch = 8
K = PATCH_SIZE[1] // PATCH_SIZE[0]        # maxpool kernel & stride = 2
HP = IMG_SIZE // PATCH_SIZE[1]            # pooled height = 4
WP = HP                                   # pooled width  = 4
NP0 = SQ * SQ                             # num_patches[0] = 64
NP1 = HP * WP                             # num_patches[1] = 16
S = NP1                                   # flattened pooled spatial size = 16
D = PROJECTION_DIM
P = KERNEL_CONV // 2                      # 'same' padding = 1
NTAPS = KERNEL_CONV * KERNEL_CONV         # 9 depthwise taps
WROWS = 16                                # weight slab rows (taps + shift, padded to 16)
_INV_SQRT2 = 0.7071067811865476

# the shift/and mask math and the pooling layout below assume this exact geometry
assert HP == 4 and WP == 4 and SQ == 8 and K == 2 and D == 128


# --------------------------------- kernel -----------------------------------
def upsampling_kernel(x_ref, wt1_ref, wt2_ref, pos_ref, out_ref, hpool_ref):
    Bt = out_ref.shape[0]                 # images in this block
    BS = Bt * S                           # flattened pooled rows: g = b*16 + h*4 + w

    # ---------------- MaxPool2d(kernel=2, stride=2) on the natural layout ----------------
    # x_ref block: (Bt*4, 16, D) with leading = b*4 + h and sublane = (r % 2)*8 + c.
    xv = x_ref[...]
    # row pairs (r = 2h, 2h+1) are the two contiguous sublane halves -> plain vector max.
    hp = jnp.maximum(xv[:, 0:8, :], xv[:, 8:16, :])          # (Bt*4, 8, D): [b*4+h, c, D]
    # column pairs (c = 2w, 2w+1) are adjacent rows of the flattened slab: stage it in a
    # small VMEM scratch and read even/odd rows back with sublane-strided loads.
    hpool_ref[...] = hp.reshape(Bt * HP * SQ, D)             # flat = b*32 + h*8 + c
    pooled = jnp.maximum(hpool_ref[pl.ds(0, BS, stride=2)],
                         hpool_ref[pl.ds(1, BS, stride=2)])  # (BS, D): g = b*16 + h*4 + w

    # ---------------- border masks for the 'same'-padded depthwise 3x3 conv --------------
    # Lane-invariant (BS, 1) masks, built once and shared by both convs.
    # HP = WP = 4, so // and % reduce to shift / and.
    idx = jax.lax.broadcasted_iota(jnp.int32, (BS, 1), 0)
    row = (idx >> 2) & 3                  # == (g // WP) % HP
    col = idx & 3                         # ==  g % WP
    masks = {}
    for di in range(-P, P + 1):
        for dj in range(-P, P + 1):
            if (di, dj) == (0, 0):
                continue
            conds = []
            if di < 0:
                conds.append(row >= -di)
            if di > 0:
                conds.append(row < HP - di)
            if dj < 0:
                conds.append(col >= -dj)
            if dj > 0:
                conds.append(col < WP - dj)
            m = conds[0]
            for c_ in conds[1:]:
                m = m & c_
            masks[(di, dj)] = m

    def dw_conv_bn_gelu(z, wt_ref):
        # Depthwise (groups == channels) 3x3 cross-correlation with 'same' padding.
        # Eval-mode BatchNorm and the conv bias are folded into the tap rows / shift row
        # of wt_ref.  Exact (erf) GELU == torch.nn.GELU() default.
        wt = wt_ref[...]                                             # (WROWS, D)
        acc = jnp.broadcast_to(wt[NTAPS:NTAPS + 1, :], z.shape)      # folded  b*s + t
        for i in range(KERNEL_CONV):
            for j in range(KERNEL_CONV):
                di, dj = i - P, j - P
                off = di * WP + dj                                   # flat-index offset
                if off == 0:
                    zt = z
                else:
                    # zt[f] = z[f + off] (cyclic), out-of-image taps masked to zero.
                    # Valid taps never cross a 16-row image group (|off| <= 5 and every
                    # crossing tap hits a border mask), so the wrap is harmless.
                    zt = pltpu.roll(z, shift=(-off) % BS, axis=0)
                    zt = jnp.where(masks[(di, dj)], zt, 0.0)
                t = i * KERNEL_CONV + j
                acc = acc + zt * wt[t:t + 1, :]
        return 0.5 * acc * (1.0 + jax.lax.erf(acc * _INV_SQRT2))

    y = dw_conv_bn_gelu(pooled, wt1_ref)
    y = dw_conv_bn_gelu(y, wt2_ref)

    # 0.5 * (pooled + DoubleConv(pooled)) + position embedding (broadcast over the batch)
    res = 0.5 * (pooled + y)
    out_ref[...] = res.reshape(Bt, S, D) + pos_ref[...][None, :, :]


# -------------------------------- wrapper ------------------------------------
def upsampling_hybrid(encoded_patches, params, *, batch_tile=32):
    B = encoded_patches.shape[0]
    assert encoded_patches.shape[1:] == (NP0, D)

    # 512 pooled rows / step: inside every chip's VMEM budget, >= 2 grid steps for large B
    # (megacore + DMA/compute pipelining), single step for tiny B.
    Bt = max(1, min(B, batch_tile))
    grid = (pl.cdiv(B, Bt),)

    # Free, order-preserving view only (NO transpose, NO extra HBM copy):
    #   leading = b*4 + h, sublane = (r % 2)*8 + c.
    x = encoded_patches.reshape(B * HP, K * SQ, D)

    pos = params["pos_emb"]                                   # (NP1, D), passed once

    # Fold eval-mode BN + conv bias into the depthwise weights:
    #   w' = w * s  (9 per-channel taps),  shift = b * s + t,
    # packed into one sublane-aligned (16, D) slab per conv.
    def fold(w, b, s, t):
        taps = (w * s[None, None, :]).reshape(NTAPS, D)
        shift = (b * s + t).reshape(1, D)
        return jnp.concatenate(
            [taps, shift, jnp.zeros((WROWS - NTAPS - 1, D), jnp.float32)], axis=0)

    wt1 = fold(params["w1"], params["b1"], params["s1"], params["t1"])
    wt2 = fold(params["w2"], params["b2"], params["s2"], params["t2"])

    nelem = B * NP1 * D
    cost = pl.CostEstimate(
        flops=80 * nelem,                                     # pool + 2 depthwise convs + mix
        transcendentals=2 * nelem,                            # one erf per conv
        bytes_accessed=4 * (B * NP0 * D + B * NP1 * D + 2 * WROWS * D + NP1 * D),
    )

    out = pl.pallas_call(
        upsampling_kernel,
        out_shape=jax.ShapeDtypeStruct((B, NP1, D), jnp.float32),
        grid_spec=pltpu.PrefetchScalarGridSpec(
            num_scalar_prefetch=0,
            grid=grid,
            in_specs=[
                pl.BlockSpec((Bt * HP, K * SQ, D), lambda g: (g, 0, 0)),   # x (natural)
                pl.BlockSpec((WROWS, D), lambda g: (0, 0)),                # folded conv1
                pl.BlockSpec((WROWS, D), lambda g: (0, 0)),                # folded conv2
                pl.BlockSpec((NP1, D), lambda g: (0, 0)),                  # pos embedding
            ],
            out_specs=pl.BlockSpec((Bt, NP1, D), lambda g: (g, 0, 0)),
            scratch_shapes=[pltpu.VMEM((Bt * HP * SQ, D), jnp.float32)],   # row-pooled stage
        ),
        compiler_params=pltpu.CompilerParams(
            dimension_semantics=("parallel",),
            vmem_limit_bytes=32 * 1024 * 1024,
        ),
        cost_estimate=cost,
    )(x, wt1, wt2, pos)

    return out                                                # already [B, NP1, D]


# -------------------------- deterministic parameters --------------------------
def init_params(key):
    ks = jax.random.split(key, 13)

    def bn_fold(kg, kb, km, kv):
        # eval-mode BatchNorm2d folded into per-channel scale / shift.
        gamma = 1.0 + 0.1 * jax.random.normal(kg, (D,), jnp.float32)
        beta = 0.1 * jax.random.normal(kb, (D,), jnp.float32)
        mean = 0.1 * jax.random.normal(km, (D,), jnp.float32)
        var = 1.0 + 0.1 * jnp.abs(jax.random.normal(kv, (D,), jnp.float32))
        s = gamma / jnp.sqrt(var + 1e-5)
        t = beta - mean * s
        return s, t

    w1 = 0.2 * jax.random.normal(ks[0], (KERNEL_CONV, KERNEL_CONV, D), jnp.float32)
    b1 = 0.1 * jax.random.normal(ks[1], (D,), jnp.float32)
    s1, t1 = bn_fold(ks[2], ks[3], ks[4], ks[5])
    w2 = 0.2 * jax.random.normal(ks[6], (KERNEL_CONV, KERNEL_CONV, D), jnp.float32)
    b2 = 0.1 * jax.random.normal(ks[7], (D,), jnp.float32)
    s2, t2 = bn_fold(ks[8], ks[9], ks[10], ks[11])
    pos_emb = 0.02 * jax.random.normal(ks[12], (NP1, D), jnp.float32)
    return dict(w1=w1, b1=b1, s1=s1, t1=t1,
                w2=w2, b2=b2, s2=s2, t2=t2, pos_emb=pos_emb)


# ---------------------------- pure-JAX reference ------------------------------
def reference(x, params):
    B = x.shape[0]
    z = x.reshape(B, HP, K, WP, K, D).max(axis=(2, 4))        # maxpool, NHWC

    def dconv(z, w, b, s, t):
        zp = jnp.pad(z, ((0, 0), (P, P), (P, P), (0, 0)))
        acc = jnp.zeros_like(z) + b.reshape(1, 1, 1, D)
        for i in range(KERNEL_CONV):
            for j in range(KERNEL_CONV):
                acc = acc + zp[:, i:i + HP, j:j + WP, :] * w[i, j].reshape(1, 1, 1, D)
        y = acc * s.reshape(1, 1, 1, D) + t.reshape(1, 1, 1, D)
        return 0.5 * y * (1.0 + jax.lax.erf(y * _INV_SQRT2))

    y = dconv(z, params["w1"], params["b1"], params["s1"], params["t1"])
    y = dconv(y, params["w2"], params["b2"], params["s2"], params["t2"])
    out = 0.5 * (z + y)
    return out.reshape(B, NP1, D) + params["pos_emb"][None]


# ----------------------------------- main -------------------------------------
if __name__ == "__main__":
    key = jax.random.PRNGKey(0)
    kx, kp = jax.random.split(key)
    params = init_params(kp)

    # primary test: B = 2 (single grid step, no batch split per the review)
    encoded_patches = jax.random.normal(kx, (2, NP0, D), jnp.float32)
    out = jax.block_until_ready(jax.jit(upsampling_hybrid)(encoded_patches, params))
    np.testing.assert_allclose(np.asarray(out), np.asarray(reference(encoded_patches, params)),
                               atol=1e-3, rtol=1e-3)
    assert out.shape == (2, NP1, D)

    # non-divisible batch test: B = 5 with a batch tile of 2 -> 3 grid steps, last block
    # partial (exercises Pallas padding + the border-mask containment argument).
    x5 = jax.random.normal(jax.random.PRNGKey(1), (5, NP0, D), jnp.float32)
    f5 = jax.jit(lambda a, p: upsampling_hybrid(a, p, batch_tile=2))
    out5 = jax.block_until_ready(f5(x5, params))
    np.testing.assert_allclose(np.asarray(out5), np.asarray(reference(x5, params)),
                               atol=1e-3, rtol=1e-3)
    assert out5.shape == (5, NP1, D)

    print("KERNEL_OK")
</pallas_src>

<mosaic_0001>
module attributes {stable_mosaic.version = 11 : i64} {
  func.func @upsampling_kernel(%arg0: i32, %arg1: memref<8x16x128xf32, #tpu.memory_space<vmem>>, %arg2: memref<16x128xf32, #tpu.memory_space<vmem>>, %arg3: memref<16x128xf32, #tpu.memory_space<vmem>>, %arg4: memref<16x128xf32, #tpu.memory_space<vmem>>, %arg5: memref<2x16x128xf32, #tpu.memory_space<vmem>>, %arg6: memref<64x128xf32, #tpu.memory_space<vmem>>) attributes {dimension_semantics = [#tpu.dimension_semantics<parallel>], iteration_bounds = array<i64: 1>, scalar_prefetch = 0 : i64, scratch_operands = 1 : i64, tpu.core_type = #tpu.core_type<tc>, window_params = [{transform_indices = @transform_0, window_bounds = array<i64: 8, 16, 128>}, {pipeline_mode = #tpu.pipeline_mode<synchronous>, transform_indices = @transform_1, window_bounds = array<i64: 16, 128>}, {pipeline_mode = #tpu.pipeline_mode<synchronous>, transform_indices = @transform_2, window_bounds = array<i64: 16, 128>}, {pipeline_mode = #tpu.pipeline_mode<synchronous>, transform_indices = @transform_3, window_bounds = array<i64: 16, 128>}, {transform_indices = @transform_4, window_bounds = array<i64: 2, 16, 128>}]} {
    %c0 = arith.constant 0 : index
    %c0_0 = arith.constant 0 : index
    %c0_1 = arith.constant 0 : index
    %0 = vector.load %arg1[%c0, %c0_0, %c0_1] : memref<8x16x128xf32, #tpu.memory_space<vmem>>, vector<8x16x128xf32>
    %1 = vector.extract_strided_slice %0 {offsets = [0, 0, 0], sizes = [8, 8, 128], strides = [1, 1, 1]} : vector<8x16x128xf32> to vector<8x8x128xf32>
    %2 = vector.extract_strided_slice %0 {offsets = [0, 8, 0], sizes = [8, 8, 128], strides = [1, 1, 1]} : vector<8x16x128xf32> to vector<8x8x128xf32>
    %3 = arith.maximumf %1, %2 : vector<8x8x128xf32>
    %4 = vector.shape_cast %3 : vector<8x8x128xf32> to vector<64x128xf32>
    %c0_2 = arith.constant 0 : index
    %c0_3 = arith.constant 0 : index
    %5 = vector.load %arg6[%c0_2, %c0_3] : memref<64x128xf32, #tpu.memory_space<vmem>>, vector<64x128xf32>
    tpu.vector_store %arg6[%c0_2, %c0_3], %4 {strides = array<i32>} : memref<64x128xf32, #tpu.memory_space<vmem>>, vector<64x128xf32>,
    %c0_4 = arith.constant 0 : index
    %c0_5 = arith.constant 0 : index
    %6 = tpu.strided_load %arg6[%c0_4, %c0_5] {strides = array<i32: 2, 1>} : memref<64x128xf32, #tpu.memory_space<vmem>>, vector<32x128xf32>
    %c1 = arith.constant 1 : index
    %c0_6 = arith.constant 0 : index
    %7 = tpu.strided_load %arg6[%c1, %c0_6] {strides = array<i32: 2, 1>} : memref<64x128xf32, #tpu.memory_space<vmem>>, vector<32x128xf32>
    %8 = arith.maximumf %6, %7 : vector<32x128xf32>
    %9 = tpu.iota {dimensions = array<i32: 0>} : vector<32x1xi32>
    %c2_i32 = arith.constant 2 : i32
    %10 = vector.broadcast %c2_i32 : i32 to vector<32x1xi32>
    %11 = arith.shrsi %9, %10 : vector<32x1xi32>
    %c3_i32 = arith.constant 3 : i32
    %12 = vector.broadcast %c3_i32 : i32 to vector<32x1xi32>
    %13 = arith.andi %11, %12 : vector<32x1xi32>
    %c3_i32_7 = arith.constant 3 : i32
    %14 = vector.broadcast %c3_i32_7 : i32 to vector<32x1xi32>
    %15 = arith.andi %9, %14 : vector<32x1xi32>
    %c1_i32 = arith.constant 1 : i32
    %16 = vector.broadcast %c1_i32 : i32 to vector<32x1xi32>
    %17 = arith.cmpi sge, %13, %16 : vector<32x1xi32>
    %c1_i32_8 = arith.constant 1 : i32
    %18 = vector.broadcast %c1_i32_8 : i32 to vector<32x1xi32>
    %19 = arith.cmpi sge, %15, %18 : vector<32x1xi32>
    %20 = arith.andi %17, %19 : vector<32x1xi1>
    %c1_i32_9 = arith.constant 1 : i32
    %21 = vector.broadcast %c1_i32_9 : i32 to vector<32x1xi32>
    %22 = arith.cmpi sge, %13, %21 : vector<32x1xi32>
    %c1_i32_10 = arith.constant 1 : i32
    %23 = vector.broadcast %c1_i32_10 : i32 to vector<32x1xi32>
    %24 = arith.cmpi sge, %13, %23 : vector<32x1xi32>
    %c3_i32_11 = arith.constant 3 : i32
    %25 = vector.broadcast %c3_i32_11 : i32 to vector<32x1xi32>
    %26 = arith.cmpi slt, %15, %25 : vector<32x1xi32>
    %27 = arith.andi %24, %26 : vector<32x1xi1>
    %c1_i32_12 = arith.constant 1 : i32
    %28 = vector.broadcast %c1_i32_12 : i32 to vector<32x1xi32>
    %29 = arith.cmpi sge, %15, %28 : vector<32x1xi32>
    %c3_i32_13 = arith.constant 3 : i32
    %30 = vector.broadcast %c3_i32_13 : i32 to vector<32x1xi32>
    %31 = arith.cmpi slt, %15, %30 : vector<32x1xi32>
    %c3_i32_14 = arith.constant 3 : i32
    %32 = vector.broadcast %c3_i32_14 : i32 to vector<32x1xi32>
    %33 = arith.cmpi slt, %13, %32 : vector<32x1xi32>
    %c1_i32_15 = arith.constant 1 : i32
    %34 = vector.broadcast %c1_i32_15 : i32 to vector<32x1xi32>
    %35 = arith.cmpi sge, %15, %34 : vector<32x1xi32>
    %36 = arith.andi %33, %35 : vector<32x1xi1>
    %c3_i32_16 = arith.constant 3 : i32
    %37 = vector.broadcast %c3_i32_16 : i32 to vector<32x1xi32>
    %38 = arith.cmpi slt, %13, %37 : vector<32x1xi32>
    %c3_i32_17 = arith.constant 3 : i32
    %39 = vector.broadcast %c3_i32_17 : i32 to vector<32x1xi32>
    %40 = arith.cmpi slt, %13, %39 : vector<32x1xi32>
    %c3_i32_18 = arith.constant 3 : i32
    %41 = vector.broadcast %c3_i32_18 : i32 to vector<32x1xi32>
    %42 = arith.cmpi slt, %15, %41 : vector<32x1xi32>
    %43 = arith.andi %40, %42 : vector<32x1xi1>
    %c0_19 = arith.constant 0 : index
    %c0_20 = arith.constant 0 : index
    %44 = vector.load %arg2[%c0_19, %c0_20] : memref<16x128xf32, #tpu.memory_space<vmem>>, vector<16x128xf32>
    %45 = vector.extract_strided_slice %44 {offsets = [9, 0], sizes = [1, 128], strides = [1, 1]} : vector<16x128xf32> to vector<1x128xf32>
    %46 = vector.shape_cast %45 : vector<1x128xf32> to vector<1x128xf32>
    %47 = vector.broadcast %46 : vector<1x128xf32> to vector<32x128xf32>
    %c5_i32 = arith.constant 5 : i32
    %48 = tpu.dynamic_rotate %8 by %c5_i32 dim 0 : vector<32x128xf32>, i32 -> vector<32x128xf32>
    %cst = arith.constant 0.000000e+00 : f32
    %49 = vector.shape_cast %20 : vector<32x1xi1> to vector<32x1xi1>
    %50 = vector.broadcast %49 : vector<32x1xi1> to vector<32x128xi1>
    %51 = vector.broadcast %cst : f32 to vector<32x128xf32>
    %52 = arith.select %50, %48, %51 : vector<32x128xi1>, vector<32x128xf32>
    %53 = vector.extract_strided_slice %44 {offsets = [0, 0], sizes = [1, 128], strides = [1, 1]} : vector<16x128xf32> to vector<1x128xf32>
    %54 = vector.broadcast %53 : vector<1x128xf32> to vector<32x128xf32>
    %55 = arith.mulf %52, %54 : vector<32x128xf32>
    %56 = arith.addf %47, %55 : vector<32x128xf32>
    %c4_i32 = arith.constant 4 : i32
    %57 = tpu.dynamic_rotate %8 by %c4_i32 dim 0 : vector<32x128xf32>, i32 -> vector<32x128xf32>
    %cst_21 = arith.constant 0.000000e+00 : f32
    %58 = vector.shape_cast %22 : vector<32x1xi1> to vector<32x1xi1>
    %59 = vector.broadcast %58 : vector<32x1xi1> to vector<32x128xi1>
    %60 = vector.broadcast %cst_21 : f32 to vector<32x128xf32>
    %61 = arith.select %59, %57, %60 : vector<32x128xi1>, vector<32x128xf32>
    %62 = vector.extract_strided_slice %44 {offsets = [1, 0], sizes = [1, 128], strides = [1, 1]} : vector<16x128xf32> to vector<1x128xf32>
    %63 = vector.broadcast %62 : vector<1x128xf32> to vector<32x128xf32>
    %64 = arith.mulf %61, %63 : vector<32x128xf32>
    %65 = arith.addf %56, %64 : vector<32x128xf32>
    %c3_i32_22 = arith.constant 3 : i32
    %66 = tpu.dynamic_rotate %8 by %c3_i32_22 dim 0 : vector<32x128xf32>, i32 -> vector<32x128xf32>
    %cst_23 = arith.constant 0.000000e+00 : f32
    %67 = vector.shape_cast %27 : vector<32x1xi1> to vector<32x1xi1>
    %68 = vector.broadcast %67 : vector<32x1xi1> to vector<32x128xi1>
    %69 = vector.broadcast %cst_23 : f32 to vector<32x128xf32>
    %70 = arith.select %68, %66, %69 : vector<32x128xi1>, vector<32x128xf32>
    %71 = vector.extract_strided_slice %44 {offsets = [2, 0], sizes = [1, 128], strides = [1, 1]} : vector<16x128xf32> to vector<1x128xf32>
    %72 = vector.broadcast %71 : vector<1x128xf32> to vector<32x128xf32>
    %73 = arith.mulf %70, %72 : vector<32x128xf32>
    %74 = arith.addf %65, %73 : vector<32x128xf32>
    %c1_i32_24 = arith.constant 1 : i32
    %75 = tpu.dynamic_rotate %8 by %c1_i32_24 dim 0 : vector<32x128xf32>, i32 -> vector<32x128xf32>
    %cst_25 = arith.constant 0.000000e+00 : f32
    %76 = vector.shape_cast %29 : vector<32x1xi1> to vector<32x1xi1>
    %77 = vector.broadcast %76 : vector<32x1xi1> to vector<32x128xi1>
    %78 = vector.broadcast %cst_25 : f32 to vector<32x128xf32>
    %79 = arith.select %77, %75, %78 : vector<32x128xi1>, vector<32x128xf32>
    %80 = vector.extract_strided_slice %44 {offsets = [3, 0], sizes = [1, 128], strides = [1, 1]} : vector<16x128xf32> to vector<1x128xf32>
    %81 = vector.broadcast %80 : vector<1x128xf32> to vector<32x128xf32>
    %82 = arith.mulf %79, %81 : vector<32x128xf32>
    %83 = arith.addf %74, %82 : vector<32x128xf32>
    %84 = vector.extract_strided_slice %44 {offsets = [4, 0], sizes = [1, 128], strides = [1, 1]} : vector<16x128xf32> to vector<1x128xf32>
    %85 = vector.broadcast %84 : vector<1x128xf32> to vector<32x128xf32>
    %86 = arith.mulf %8, %85 : vector<32x128xf32>
    %87 = arith.addf %83, %86 : vector<32x128xf32>
    %c31_i32 = arith.constant 31 : i32
    %88 = tpu.dynamic_rotate %8 by %c31_i32 dim 0 : vector<32x128xf32>, i32 -> vector<32x128xf32>
    %cst_26 = arith.constant 0.000000e+00 : f32
    %89 = vector.shape_cast %31 : vector<32x1xi1> to vector<32x1xi1>
    %90 = vector.broadcast %89 : vector<32x1xi1> to vector<32x128xi1>
    %91 = vector.broadcast %cst_26 : f32 to vector<32x128xf32>
    %92 = arith.select %90, %88, %91 : vector<32x128xi1>, vector<32x128xf32>
    %93 = vector.extract_strided_slice %44 {offsets = [5, 0], sizes = [1, 128], strides = [1, 1]} : vector<16x128xf32> to vector<1x128xf32>
    %94 = vector.broadcast %93 : vector<1x128xf32> to vector<32x128xf32>
    %95 = arith.mulf %92, %94 : vector<32x128xf32>
    %96 = arith.addf %87, %95 : vector<32x128xf32>
    %c29_i32 = arith.constant 29 : i32
    %97 = tpu.dynamic_rotate %8 by %c29_i32 dim 0 : vector<32x128xf32>, i32 -> vector<32x128xf32>
    %cst_27 = arith.constant 0.000000e+00 : f32
    %98 = vector.shape_cast %36 : vector<32x1xi1> to vector<32x1xi1>
    %99 = vector.broadcast %98 : vector<32x1xi1> to vector<32x128xi1>
    %100 = vector.broadcast %cst_27 : f32 to vector<32x128xf32>
    %101 = arith.select %99, %97, %100 : vector<32x128xi1>, vector<32x128xf32>
    %102 = vector.extract_strided_slice %44 {offsets = [6, 0], sizes = [1, 128], strides = [1, 1]} : vector<16x128xf32> to vector<1x128xf32>
    %103 = vector.broadcast %102 : vector<1x128xf32> to vector<32x128xf32>
    %104 = arith.mulf %101, %103 : vector<32x128xf32>
    %105 = arith.addf %96, %104 : vector<32x128xf32>
    %c28_i32 = arith.constant 28 : i32
    %106 = tpu.dynamic_rotate %8 by %c28_i32 dim 0 : vector<32x128xf32>, i32 -> vector<32x128xf32>
    %cst_28 = arith.constant 0.000000e+00 : f32
    %107 = vector.shape_cast %38 : vector<32x1xi1> to vector<32x1xi1>
    %108 = vector.broadcast %107 : vector<32x1xi1> to vector<32x128xi1>
    %109 = vector.broadcast %cst_28 : f32 to vector<32x128xf32>
    %110 = arith.select %108, %106, %109 : vector<32x128xi1>, vector<32x128xf32>
    %111 = vector.extract_strided_slice %44 {offsets = [7, 0], sizes = [1, 128], strides = [1, 1]} : vector<16x128xf32> to vector<1x128xf32>
    %112 = vector.broadcast %111 : vector<1x128xf32> to vector<32x128xf32>
    %113 = arith.mulf %110, %112 : vector<32x128xf32>
    %114 = arith.addf %105, %113 : vector<32x128xf32>
    %c27_i32 = arith.constant 27 : i32
    %115 = tpu.dynamic_rotate %8 by %c27_i32 dim 0 : vector<32x128xf32>, i32 -> vector<32x128xf32>
    %cst_29 = arith.constant 0.000000e+00 : f32
    %116 = vector.shape_cast %43 : vector<32x1xi1> to vector<32x1xi1>
    %117 = vector.broadcast %116 : vector<32x1xi1> to vector<32x128xi1>
    %118 = vector.broadcast %cst_29 : f32 to vector<32x128xf32>
    %119 = arith.select %117, %115, %118 : vector<32x128xi1>, vector<32x128xf32>
    %120 = vector.extract_strided_slice %44 {offsets = [8, 0], sizes = [1, 128], strides = [1, 1]} : vector<16x128xf32> to vector<1x128xf32>
    %121 = vector.broadcast %120 : vector<1x128xf32> to vector<32x128xf32>
    %122 = arith.mulf %119, %121 : vector<32x128xf32>
    %123 = arith.addf %114, %122 : vector<32x128xf32>
    %cst_30 = arith.constant 5.000000e-01 : f32
    %124 = vector.broadcast %cst_30 : f32 to vector<32x128xf32>
    %125 = arith.mulf %124, %123 : vector<32x128xf32>
    %cst_31 = arith.constant 0.707106769 : f32
    %126 = vector.broadcast %cst_31 : f32 to vector<32x128xf32>
    %127 = arith.mulf %123, %126 : vector<32x128xf32>
    %128 = math.erf %127 : vector<32x128xf32>
    %cst_32 = arith.constant 1.000000e+00 : f32
    %129 = vector.broadcast %cst_32 : f32 to vector<32x128xf32>
    %130 = arith.addf %129, %128 : vector<32x128xf32>
    %131 = arith.mulf %125, %130 : vector<32x128xf32>
    %c0_33 = arith.constant 0 : index
    %c0_34 = arith.constant 0 : index
    %132 = vector.load %arg3[%c0_33, %c0_34] : memref<16x128xf32, #tpu.memory_space<vmem>>, vector<16x128xf32>
    %133 = vector.extract_strided_slice %132 {offsets = [9, 0], sizes = [1, 128], strides = [1, 1]} : vector<16x128xf32> to vector<1x128xf32>
    %134 = vector.shape_cast %133 : vector<1x128xf32> to vector<1x128xf32>
    %135 = vector.broadcast %134 : vector<1x128xf32> to vector<32x128xf32>
    %c5_i32_35 = arith.constant 5 : i32
    %136 = tpu.dynamic_rotate %131 by %c5_i32_35 dim 0 : vector<32x128xf32>, i32 -> vector<32x128xf32>
    %cst_36 = arith.constant 0.000000e+00 : f32
    %137 = vector.shape_cast %20 : vector<32x1xi1> to vector<32x1xi1>
    %138 = vector.broadcast %137 : vector<32x1xi1> to vector<32x128xi1>
    %139 = vector.broadcast %cst_36 : f32 to vector<32x128xf32>
    %140 = arith.select %138, %136, %139 : vector<32x128xi1>, vector<32x128xf32>
    %141 = vector.extract_strided_slice %132 {offsets = [0, 0], sizes = [1, 128], strides = [1, 1]} : vector<16x128xf32> to vector<1x128xf32>
    %142 = vector.broadcast %141 : vector<1x128xf32> to vector<32x128xf32>
    %143 = arith.mulf %140, %142 : vector<32x128xf32>
    %144 = arith.addf %135, %143 : vector<32x128xf32>
    %c4_i32_37 = arith.constant 4 : i32
    %145 = tpu.dynamic_rotate %131 by %c4_i32_37 dim 0 : vector<32x128xf32>, i32 -> vector<32x128xf32>
    %cst_38 = arith.constant 0.000000e+00 : f32
    %146 = vector.shape_cast %22 : vector<32x1xi1> to vector<32x1xi1>
    %147 = vector.broadcast %146 : vector<32x1xi1> to vector<32x128xi1>
    %148 = vector.broadcast %cst_38 : f32 to vector<32x128xf32>
    %149 = arith.select %147, %145, %148 : vector<32x128xi1>, vector<32x128xf32>
    %150 = vector.extract_strided_slice %132 {offsets = [1, 0], sizes = [1, 128], strides = [1, 1]} : vector<16x128xf32> to vector<1x128xf32>
    %151 = vector.broadcast %150 : vector<1x128xf32> to vector<32x128xf32>
    %152 = arith.mulf %149, %151 : vector<32x128xf32>
    %153 = arith.addf %144, %152 : vector<32x128xf32>
    %c3_i32_39 = arith.constant 3 : i32
    %154 = tpu.dynamic_rotate %131 by %c3_i32_39 dim 0 : vector<32x128xf32>, i32 -> vector<32x128xf32>
    %cst_40 = arith.constant 0.000000e+00 : f32
    %155 = vector.shape_cast %27 : vector<32x1xi1> to vector<32x1xi1>
    %156 = vector.broadcast %155 : vector<32x1xi1> to vector<32x128xi1>
    %157 = vector.broadcast %cst_40 : f32 to vector<32x128xf32>
    %158 = arith.select %156, %154, %157 : vector<32x128xi1>, vector<32x128xf32>
    %159 = vector.extract_strided_slice %132 {offsets = [2, 0], sizes = [1, 128], strides = [1, 1]} : vector<16x128xf32> to vector<1x128xf32>
    %160 = vector.broadcast %159 : vector<1x128xf32> to vector<32x128xf32>
    %161 = arith.mulf %158, %160 : vector<32x128xf32>
    %162 = arith.addf %153, %161 : vector<32x128xf32>
    %c1_i32_41 = arith.constant 1 : i32
    %163 = tpu.dynamic_rotate %131 by %c1_i32_41 dim 0 : vector<32x128xf32>, i32 -> vector<32x128xf32>
    %cst_42 = arith.constant 0.000000e+00 : f32
    %164 = vector.shape_cast %29 : vector<32x1xi1> to vector<32x1xi1>
    %165 = vector.broadcast %164 : vector<32x1xi1> to vector<32x128xi1>
    %166 = vector.broadcast %cst_42 : f32 to vector<32x128xf32>
    %167 = arith.select %165, %163, %166 : vector<32x128xi1>, vector<32x128xf32>
    %168 = vector.extract_strided_slice %132 {offsets = [3, 0], sizes = [1, 128], strides = [1, 1]} : vector<16x128xf32> to vector<1x128xf32>
    %169 = vector.broadcast %168 : vector<1x128xf32> to vector<32x128xf32>
    %170 = arith.mulf %167, %169 : vector<32x128xf32>
    %171 = arith.addf %162, %170 : vector<32x128xf32>
    %172 = vector.extract_strided_slice %132 {offsets = [4, 0], sizes = [1, 128], strides = [1, 1]} : vector<16x128xf32> to vector<1x128xf32>
    %173 = vector.broadcast %172 : vector<1x128xf32> to vector<32x128xf32>
    %174 = arith.mulf %131, %173 : vector<32x128xf32>
    %175 = arith.addf %171, %174 : vector<32x128xf32>
    %c31_i32_43 = arith.constant 31 : i32
    %176 = tpu.dynamic_rotate %131 by %c31_i32_43 dim 0 : vector<32x128xf32>, i32 -> vector<32x128xf32>
    %cst_44 = arith.constant 0.000000e+00 : f32
    %177 = vector.shape_cast %31 : vector<32x1xi1> to vector<32x1xi1>
    %178 = vector.broadcast %177 : vector<32x1xi1> to vector<32x128xi1>
    %179 = vector.broadcast %cst_44 : f32 to vector<32x128xf32>
    %180 = arith.select %178, %176, %179 : vector<32x128xi1>, vector<32x128xf32>
    %181 = vector.extract_strided_slice %132 {offsets = [5, 0], sizes = [1, 128], strides = [1, 1]} : vector<16x128xf32> to vector<1x128xf32>
    %182 = vector.broadcast %181 : vector<1x128xf32> to vector<32x128xf32>
    %183 = arith.mulf %180, %182 : vector<32x128xf32>
    %184 = arith.addf %175, %183 : vector<32x128xf32>
    %c29_i32_45 = arith.constant 29 : i32
    %185 = tpu.dynamic_rotate %131 by %c29_i32_45 dim 0 : vector<32x128xf32>, i32 -> vector<32x128xf32>
    %cst_46 = arith.constant 0.000000e+00 : f32
    %186 = vector.shape_cast %36 : vector<32x1xi1> to vector<32x1xi1>
    %187 = vector.broadcast %186 : vector<32x1xi1> to vector<32x128xi1>
    %188 = vector.broadcast %cst_46 : f32 to vector<32x128xf32>
    %189 = arith.select %187, %185, %188 : vector<32x128xi1>, vector<32x128xf32>
    %190 = vector.extract_strided_slice %132 {offsets = [6, 0], sizes = [1, 128], strides = [1, 1]} : vector<16x128xf32> to vector<1x128xf32>
    %191 = vector.broadcast %190 : vector<1x128xf32> to vector<32x128xf32>
    %192 = arith.mulf %189, %191 : vector<32x128xf32>
    %193 = arith.addf %184, %192 : vector<32x128xf32>
    %c28_i32_47 = arith.constant 28 : i32
    %194 = tpu.dynamic_rotate %131 by %c28_i32_47 dim 0 : vector<32x128xf32>, i32 -> vector<32x128xf32>
    %cst_48 = arith.constant 0.000000e+00 : f32
    %195 = vector.shape_cast %38 : vector<32x1xi1> to vector<32x1xi1>
    %196 = vector.broadcast %195 : vector<32x1xi1> to vector<32x128xi1>
    %197 = vector.broadcast %cst_48 : f32 to vector<32x128xf32>
    %198 = arith.select %196, %194, %197 : vector<32x128xi1>, vector<32x128xf32>
    %199 = vector.extract_strided_slice %132 {offsets = [7, 0], sizes = [1, 128], strides = [1, 1]} : vector<16x128xf32> to vector<1x128xf32>
    %200 = vector.broadcast %199 : vector<1x128xf32> to vector<32x128xf32>
    %201 = arith.mulf %198, %200 : vector<32x128xf32>
    %202 = arith.addf %193, %201 : vector<32x128xf32>
    %c27_i32_49 = arith.constant 27 : i32
    %203 = tpu.dynamic_rotate %131 by %c27_i32_49 dim 0 : vector<32x128xf32>, i32 -> vector<32x128xf32>
    %cst_50 = arith.constant 0.000000e+00 : f32
    %204 = vector.shape_cast %43 : vector<32x1xi1> to vector<32x1xi1>
    %205 = vector.broadcast %204 : vector<32x1xi1> to vector<32x128xi1>
    %206 = vector.broadcast %cst_50 : f32 to vector<32x128xf32>
    %207 = arith.select %205, %203, %206 : vector<32x128xi1>, vector<32x128xf32>
    %208 = vector.extract_strided_slice %132 {offsets = [8, 0], sizes = [1, 128], strides = [1, 1]} : vector<16x128xf32> to vector<1x128xf32>
    %209 = vector.broadcast %208 : vector<1x128xf32> to vector<32x128xf32>
    %210 = arith.mulf %207, %209 : vector<32x128xf32>
    %211 = arith.addf %202, %210 : vector<32x128xf32>
    %cst_51 = arith.constant 5.000000e-01 : f32
    %212 = vector.broadcast %cst_51 : f32 to vector<32x128xf32>
    %213 = arith.mulf %212, %211 : vector<32x128xf32>
    %cst_52 = arith.constant 0.707106769 : f32
    %214 = vector.broadcast %cst_52 : f32 to vector<32x128xf32>
    %215 = arith.mulf %211, %214 : vector<32x128xf32>
    %216 = math.erf %215 : vector<32x128xf32>
    %cst_53 = arith.constant 1.000000e+00 : f32
    %217 = vector.broadcast %cst_53 : f32 to vector<32x128xf32>
    %218 = arith.addf %217, %216 : vector<32x128xf32>
    %219 = arith.mulf %213, %218 : vector<32x128xf32>
    %220 = arith.addf %8, %219 : vector<32x128xf32>
    %cst_54 = arith.constant 5.000000e-01 : f32
    %221 = vector.broadcast %cst_54 : f32 to vector<32x128xf32>
    %222 = arith.mulf %221, %220 : vector<32x128xf32>
    %223 = vector.shape_cast %222 : vector<32x128xf32> to vector<2x16x128xf32>
    %c0_55 = arith.constant 0 : index
    %c0_56 = arith.constant 0 : index
    %224 = vector.load %arg4[%c0_55, %c0_56] : memref<16x128xf32, #tpu.memory_space<vmem>>, vector<16x128xf32>
    %225 = vector.shape_cast %224 : vector<16x128xf32> to vector<1x16x128xf32>
    %226 = vector.broadcast %225 : vector<1x16x128xf32> to vector<2x16x128xf32>
    %227 = arith.addf %223, %226 : vector<2x16x128xf32>
    %c0_57 = arith.constant 0 : index
    %c0_58 = arith.constant 0 : index
    %c0_59 = arith.constant 0 : index
    %228 = vector.load %arg5[%c0_57, %c0_58, %c0_59] : memref<2x16x128xf32, #tpu.memory_space<vmem>>, vector<2x16x128xf32>
    tpu.vector_store %arg5[%c0_57, %c0_58, %c0_59], %227 {strides = array<i32>} : memref<2x16x128xf32, #tpu.memory_space<vmem>>, vector<2x16x128xf32>,
    return
  }
  func.func @transform_0(%arg0: i32) -> (i32, i32, i32) {
    %c0_i32 = arith.constant 0 : i32
    %c0_i32_0 = arith.constant 0 : i32
    %c0_i32_1 = arith.constant 0 : i32
    return %arg0, %c0_i32, %c0_i32_0 : i32, i32, i32
  }
  func.func @transform_1(%arg0: i32) -> (i32, i32) {
    %c0_i32 = arith.constant 0 : i32
    %c0_i32_0 = arith.constant 0 : i32
    %c0_i32_1 = arith.constant 0 : i32
    return %c0_i32, %c0_i32_0 : i32, i32
  }
  func.func @transform_2(%arg0: i32) -> (i32, i32) {
    %c0_i32 = arith.constant 0 : i32
    %c0_i32_0 = arith.constant 0 : i32
    %c0_i32_1 = arith.constant 0 : i32
    return %c0_i32, %c0_i32_0 : i32, i32
  }
  func.func @transform_3(%arg0: i32) -> (i32, i32) {
    %c0_i32 = arith.constant 0 : i32
    %c0_i32_0 = arith.constant 0 : i32
    %c0_i32_1 = arith.constant 0 : i32
    return %c0_i32, %c0_i32_0 : i32, i32
  }
  func.func @transform_4(%arg0: i32) -> (i32, i32, i32) {
    %c0_i32 = arith.constant 0 : i32
    %c0_i32_0 = arith.constant 0 : i32
    %c0_i32_1 = arith.constant 0 : i32
    return %arg0, %c0_i32, %c0_i32_0 : i32, i32, i32
  }
}

</mosaic_0001>

<llo_original>
// kernel: upsampling_hybrid.1
$region0: #{upsampling_hybrid.1}
  #allocation0 [shape = 'u32[]', space=smem, size = 0x4, offset = 0x4, fixed_abs, tag = 'smem constant byte address 0x4 - core index']
  #allocation1 [shape = 'u32[144,128]{1,0:T(1,128)}', space=vmem, size = 0x12000, scoped, tag = 'internal scratch']
  #allocation2 [shape = 'f32[64,128]{1,0:T(8,128)}', space=vmem, size = 0x8000, scoped, tag = 'scratch operand']
  %s0 = inlined_call_operand.vmem [shape: f32[8,16,128], index: 0, kind: input, shape index: {}]
  %s1 = inlined_call_operand.vmem [shape: f32[16,128], index: 1, kind: input, shape index: {}]
  %s2 = inlined_call_operand.vmem [shape: f32[16,128], index: 2, kind: input, shape index: {}]
  %s3 = inlined_call_operand.vmem [shape: f32[16,128], index: 3, kind: input, shape index: {}]
  %s4 = inlined_call_operand.hbm [shape: f32[2,16,128], index: 4, kind: output, shape index: {}]
  %s5 = sld [smem:[#allocation0]]
  $region26: #{upsampling_hybrid.1} parent=0
    _
  %s7 = ssub.s32 1, %s5
  %s8 = scalar_select 0, %s7, %s5
  $region1: #{upsampling_hybrid.1} parent=0
    #allocation3 [shape = 'u8[16384]{0}', space=vmem, size = 0x4000, scoped, tag = 'output window, operand 0, single buffered']
    #allocation4 [shape = 's32[1]{0}', space=sflag, size = 0x4, scoped, tag = 'scoped memory for upsampling_hybrid.1']
    %9 = vsyncpa [#allocation4], 0
    // Predicated region
    $region2: #{upsampling_hybrid.1} parent=1 // pred_check
      _
    $region3: #{upsampling_hybrid.1} parent=1 // pred_check_branch
      %11 = sbr.rel (0) target = $region5
    $region4: #{upsampling_hybrid.1} parent=1 // pred_region
      _
    $region5: #{upsampling_hybrid.1} parent=1 // pred_fallthru
      _
    // Predicated region
    $region6: #{upsampling_hybrid.1} parent=1 // pred_check
      _
    $region7: #{upsampling_hybrid.1} parent=1 // pred_check_branch
      %13 = sbr.rel (0) target = $region9
    $region8: #{upsampling_hybrid.1} parent=1 // pred_region
      _
    $region9: #{upsampling_hybrid.1} parent=1 // pred_fallthru
      _
    // Predicated region
    $region10: #{upsampling_hybrid.1} parent=1 // pred_check
      _
    $region11: #{upsampling_hybrid.1} parent=1 // pred_check_branch
      %15 = sbr.rel (0) target = $region13
    $region12: #{upsampling_hybrid.1} parent=1 // pred_region
      _
    $region13: #{upsampling_hybrid.1} parent=1 // pred_fallthru
      _
    // Predicated region
    $region14: #{upsampling_hybrid.1} parent=1 // pred_check
      _
    $region15: #{upsampling_hybrid.1} parent=1 // pred_check_branch
      %17 = sbr.rel (0) target = $region17
    $region16: #{upsampling_hybrid.1} parent=1 // pred_region
      _
    $region17: #{upsampling_hybrid.1} parent=1 // pred_fallthru
      _
    %v18 = vld [vmem:[%s0] sm:$0xff]
    %v19 = vld [vmem:[%s0 + $0x8] sm:$0xff]
    %v20 = vld [vmem:[%s0 + $0x10] sm:$0xff]
    %v21 = vld [vmem:[%s0 + $0x18] sm:$0xff]
    %v22 = vld [vmem:[%s0 + $0x20] sm:$0xff]
    %v23 = vld [vmem:[%s0 + $0x28] sm:$0xff]
    %v24 = vld [vmem:[%s0 + $0x30] sm:$0xff]
    %v25 = vld [vmem:[%s0 + $0x38] sm:$0xff]
    %v26 = vld [vmem:[%s0 + $0x40] sm:$0xff]
    %v27 = vld [vmem:[%s0 + $0x48] sm:$0xff]
    %v28 = vld [vmem:[%s0 + $0x50] sm:$0xff]
    %v29 = vld [vmem:[%s0 + $0x58] sm:$0xff]
    %v30 = vld [vmem:[%s0 + $0x60] sm:$0xff]
    %v31 = vld [vmem:[%s0 + $0x68] sm:$0xff]
    %v32 = vld [vmem:[%s0 + $0x70] sm:$0xff]
    %v33 = vld [vmem:[%s0 + $0x78] sm:$0xff]
    %v34 = vmax.f32 %v18, %v19
    %v35 = vmax.f32 %v20, %v21
    %v36 = vmax.f32 %v22, %v23
    %v37 = vmax.f32 %v24, %v25
    %v38 = vmax.f32 %v26, %v27
    %v39 = vmax.f32 %v28, %v29
    %v40 = vmax.f32 %v30, %v31
    %v41 = vmax.f32 %v32, %v33
    %42 = vst [vmem:[#allocation2] sm:$0xff] %v34
    %43 = vst [vmem:[#allocation2 + $0x8] sm:$0xff] %v35
    %44 = vst [vmem:[#allocation2 + $0x10] sm:$0xff] %v36
    %45 = vst [vmem:[#allocation2 + $0x18] sm:$0xff] %v37
    %46 = vst [vmem:[#allocation2 + $0x20] sm:$0xff] %v38
    %47 = vst [vmem:[#allocation2 + $0x28] sm:$0xff] %v39
    %48 = vst [vmem:[#allocation2 + $0x30] sm:$0xff] %v40
    %49 = vst [vmem:[#allocation2 + $0x38] sm:$0xff] %v41
    %v50 = vld [vmem:[#allocation2] ss:$2 sm:$0xff]
    %s51 = scalar_lea.vmem [#allocation2], 16
    %v52 = vld [vmem:[%s51] ss:$2 sm:$0xff]
    %s53 = scalar_lea.vmem [#allocation2], 32
    %v54 = vld [vmem:[%s53] ss:$2 sm:$0xff]
    %s55 = scalar_lea.vmem [#allocation2], 48
    %v56 = vld [vmem:[%s55] ss:$2 sm:$0xff]
    %s57 = scalar_lea.vmem [#allocation2], 1
    %v58 = vld [vmem:[%s57] ss:$2 sm:$0xff]
    %s59 = scalar_lea.vmem [#allocation2], 17
    %v60 = vld [vmem:[%s59] ss:$2 sm:$0xff]
    %s61 = scalar_lea.vmem [#allocation2], 33
    %v62 = vld [vmem:[%s61] ss:$2 sm:$0xff]
    %s63 = scalar_lea.vmem [#allocation2], 49
    %v64 = vld [vmem:[%s63] ss:$2 sm:$0xff]
    %v65 = vmax.f32 %v50, %v58
    %v66 = vmax.f32 %v52, %v60
    %v67 = vmax.f32 %v54, %v62
    %v68 = vmax.f32 %v56, %v64
    %v69 = vlaneseq
    %v70 = vshrl.u32 %v69, 7
    %v71 = vadd.s32 %v70, 8
    %v72 = vadd.s32 %v70, 16
    %v73 = vadd.s32 %v70, 24
    %v74 = vshra.s32 %v70, 2
    %v75 = vshra.s32 %v71, 2
    %v76 = vshra.s32 %v72, 2
    %v77 = vshra.s32 %v73, 2
    %v78 = vand.u32 %v74, 3
    %v79 = vand.u32 %v75, 3
    %v80 = vand.u32 %v76, 3
    %v81 = vand.u32 %v77, 3
    %v82 = vand.u32 %v70, 3
    %v83 = vand.u32 %v71, 3
    %v84 = vand.u32 %v72, 3
    %v85 = vand.u32 %v73, 3
    %vm86 = vcmp.ge.s32.totalorder %v78, 1
    %vm87 = vcmp.ge.s32.totalorder %v79, 1
    %vm88 = vcmp.ge.s32.totalorder %v80, 1
    %vm89 = vcmp.ge.s32.totalorder %v81, 1
    %vm90 = vcmp.ge.s32.totalorder %v82, 1
    %vm91 = vcmp.ge.s32.totalorder %v83, 1
    %vm92 = vcmp.ge.s32.totalorder %v84, 1
    %vm93 = vcmp.ge.s32.totalorder %v85, 1
    %vm94 = vmand %vm86, %vm90
    %vm95 = vmand %vm87, %vm91
    %vm96 = vmand %vm88, %vm92
    %vm97 = vmand %vm89, %vm93
    %vm98 = vcmp.lt.s32.totalorder %v82, 3
    %vm99 = vcmp.lt.s32.totalorder %v83, 3
    %vm100 = vcmp.lt.s32.totalorder %v84, 3
    %vm101 = vcmp.lt.s32.totalorder %v85, 3
    %vm102 = vmand %vm86, %vm98
    %vm103 = vmand %vm87, %vm99
    %vm104 = vmand %vm88, %vm100
    %vm105 = vmand %vm89, %vm101
    %vm106 = vcmp.lt.s32.totalorder %v78, 3
    %vm107 = vcmp.lt.s32.totalorder %v79, 3
    %vm108 = vcmp.lt.s32.totalorder %v80, 3
    %vm109 = vcmp.lt.s32.totalorder %v81, 3
    %vm110 = vmand %vm106, %vm90
    %vm111 = vmand %vm107, %vm91
    %vm112 = vmand %vm108, %vm92
    %vm113 = vmand %vm109, %vm93
    %vm114 = vmand %vm106, %vm98
    %vm115 = vmand %vm107, %vm99
    %vm116 = vmand %vm108, %vm100
    %vm117 = vmand %vm109, %vm101
    %v118 = vld [vmem:[%s1] sm:$0xff]
    %v119 = vld [vmem:[%s1 + $0x8] sm:$0xff]
    %v120 = vlaneseq
    %v121 = vshrl.u32 %v120, 7
    %v122 = vsub.s32 1, %v121
    %v123 = vrot.slane %v119, %v122
    %v124 = vrot.slane %v65, 3
    %v125 = vrot.slane %v66, 3
    %v126 = vrot.slane %v67, 3
    %v127 = vrot.slane %v68, 3
    %vm128 = vcmp.lt.s32.totalorder %v70, 5
    %v129 = vsel %vm128, %v126, %v127
    %v130 = vsel %vm128, %v125, %v126
    %v131 = vsel %vm128, %v124, %v125
    %v132 = vsel %vm128, %v127, %v124
    %v133 = vsel %vm94, 1, 0
    %v134 = vsel %vm95, 1, 0
    %v135 = vsel %vm96, 1, 0
    %v136 = vsel %vm97, 1, 0
    %vm137 = vcmp.eq.s32.totalorder %v133, 1
    %vm138 = vcmp.eq.s32.totalorder %v134, 1
    %vm139 = vcmp.eq.s32.totalorder %v135, 1
    %vm140 = vcmp.eq.s32.totalorder %v136, 1
    %v141 = vsel %vm137, %v132, 0.0
    %v142 = vsel %vm138, %v131, 0.0
    %v143 = vsel %vm139, %v130, 0.0
    %v144 = vsel %vm140, %v129, 0.0
    %v145 = vlaneseq
    %v146 = vshrl.u32 %v145, 7
    %v147 = vsub.s32 0, %v146
    %v148 = vrot.slane %v118, %v147
    %v149 = vmul.f32 %v141, %v148
    %v150 = vmul.f32 %v142, %v148
    %v151 = vmul.f32 %v143, %v148
    %v152 = vmul.f32 %v144, %v148
    %v153 = vadd.f32 %v123, %v149
    %v154 = vadd.f32 %v123, %v150
    %v155 = vadd.f32 %v123, %v151
    %v156 = vadd.f32 %v123, %v152
    %v157 = vrot.slane %v65, 4
    %v158 = vrot.slane %v66, 4
    %v159 = vrot.slane %v67, 4
    %v160 = vrot.slane %v68, 4
    %vm161 = vcmp.lt.s32.totalorder %v70, 4
    %v162 = vsel %vm161, %v159, %v160
    %v163 = vsel %vm161, %v158, %v159
    %v164 = vsel %vm161, %v157, %v158
    %v165 = vsel %vm161, %v160, %v157
    %v166 = vsel %vm86, 1, 0
    %v167 = vsel %vm87, 1, 0
    %v168 = vsel %vm88, 1, 0
    %v169 = vsel %vm89, 1, 0
    %vm170 = vcmp.eq.s32.totalorder %v166, 1
    %vm171 = vcmp.eq.s32.totalorder %v167, 1
    %vm172 = vcmp.eq.s32.totalorder %v168, 1
    %vm173 = vcmp.eq.s32.totalorder %v169, 1
    %v174 = vsel %vm170, %v165, 0.0
    %v175 = vsel %vm171, %v164, 0.0
    %v176 = vsel %vm172, %v163, 0.0
    %v177 = vsel %vm173, %v162, 0.0
    %v178 = vlaneseq
    %v179 = vshrl.u32 %v178, 7
    %v180 = vsub.s32 1, %v179
    %v181 = vrot.slane %v118, %v180
    %v182 = vmul.f32 %v174, %v181
    %v183 = vmul.f32 %v175, %v181
    %v184 = vmul.f32 %v176, %v181
    %v185 = vmul.f32 %v177, %v181
    %v186 = vadd.f32 %v153, %v182
    %v187 = vadd.f32 %v154, %v183
    %v188 = vadd.f32 %v155, %v184
    %v189 = vadd.f32 %v156, %v185
    %v190 = vrot.slane %v65, 5
    %v191 = vrot.slane %v66, 5
    %v192 = vrot.slane %v67, 5
    %v193 = vrot.slane %v68, 5
    %vm194 = vcmp.lt.s32.totalorder %v70, 3
    %v195 = vsel %vm194, %v192, %v193
    %v196 = vsel %vm194, %v191, %v192
    %v197 = vsel %vm194, %v190, %v191
    %v198 = vsel %vm194, %v193, %v190
    %v199 = vsel %vm102, 1, 0
    %v200 = vsel %vm103, 1, 0
    %v201 = vsel %vm104, 1, 0
    %v202 = vsel %vm105, 1, 0
    %vm203 = vcmp.eq.s32.totalorder %v199, 1
    %vm204 = vcmp.eq.s32.totalorder %v200, 1
    %vm205 = vcmp.eq.s32.totalorder %v201, 1
    %vm206 = vcmp.eq.s32.totalorder %v202, 1
    %v207 = vsel %vm203, %v198, 0.0
    %v208 = vsel %vm204, %v197, 0.0
    %v209 = vsel %vm205, %v196, 0.0
    %v210 = vsel %vm206, %v195, 0.0
    %v211 = vlaneseq
    %v212 = vshrl.u32 %v211, 7
    %v213 = vsub.s32 2, %v212
    %v214 = vrot.slane %v118, %v213
    %v215 = vmul.f32 %v207, %v214
    %v216 = vmul.f32 %v208, %v214
    %v217 = vmul.f32 %v209, %v214
    %v218 = vmul.f32 %v210, %v214
    %v219 = vadd.f32 %v186, %v215
    %v220 = vadd.f32 %v187, %v216
    %v221 = vadd.f32 %v188, %v217
    %v222 = vadd.f32 %v189, %v218
    %v223 = vrot.slane %v65, 7
    %v224 = vrot.slane %v66, 7
    %v225 = vrot.slane %v67, 7
    %v226 = vrot.slane %v68, 7
    %vm227 = vcmp.lt.s32.totalorder %v70, 1
    %v228 = vsel %vm227, %v225, %v226
    %v229 = vsel %vm227, %v224, %v225
    %v230 = vsel %vm227, %v223, %v224
    %v231 = vsel %vm227, %v226, %v223
    %v232 = vsel %vm90, 1, 0
    %v233 = vsel %vm91, 1, 0
    %v234 = vsel %vm92, 1, 0
    %v235 = vsel %vm93, 1, 0
    %vm236 = vcmp.eq.s32.totalorder %v232, 1
    %vm237 = vcmp.eq.s32.totalorder %v233, 1
    %vm238 = vcmp.eq.s32.totalorder %v234, 1
    %vm239 = vcmp.eq.s32.totalorder %v235, 1
    %v240 = vsel %vm236, %v231, 0.0
    %v241 = vsel %vm237, %v230, 0.0
    %v242 = vsel %vm238, %v229, 0.0
    %v243 = vsel %vm239, %v228, 0.0
    %v244 = vlaneseq
    %v245 = vshrl.u32 %v244, 7
    %v246 = vsub.s32 3, %v245
    %v247 = vrot.slane %v118, %v246
    %v248 = vmul.f32 %v240, %v247
    %v249 = vmul.f32 %v241, %v247
    %v250 = vmul.f32 %v242, %v247
    %v251 = vmul.f32 %v243, %v247
    %v252 = vadd.f32 %v219, %v248
    %v253 = vadd.f32 %v220, %v249
    %v254 = vadd.f32 %v221, %v250
    %v255 = vadd.f32 %v222, %v251
    %v256 = vlaneseq
    %v257 = vshrl.u32 %v256, 7
    %v258 = vsub.s32 4, %v257
    %v259 = vrot.slane %v118, %v258
    %v260 = vmul.f32 %v65, %v259
    %v261 = vmul.f32 %v66, %v259
    %v262 = vmul.f32 %v67, %v259
    %v263 = vmul.f32 %v68, %v259
    %v264 = vadd.f32 %v252, %v260
    %v265 = vadd.f32 %v253, %v261
    %v266 = vadd.f32 %v254, %v262
    %v267 = vadd.f32 %v255, %v263
    %v268 = vrot.slane %v65, 1
    %v269 = vrot.slane %v66, 1
    %v270 = vrot.slane %v67, 1
    %v271 = vrot.slane %v68, 1
    %vm272 = vcmp.lt.s32.totalorder %v70, 7
    %v273 = vsel %vm272, %v270, %v271
    %v274 = vsel %vm272, %v269, %v270
    %v275 = vsel %vm272, %v268, %v269
    %v276 = vsel %vm272, %v271, %v268
    %v277 = vsel %vm98, 1, 0
    %v278 = vsel %vm99, 1, 0
    %v279 = vsel %vm100, 1, 0
    %v280 = vsel %vm101, 1, 0
    %vm281 = vcmp.eq.s32.totalorder %v277, 1
    %vm282 = vcmp.eq.s32.totalorder %v278, 1
    %vm283 = vcmp.eq.s32.totalorder %v279, 1
    %vm284 = vcmp.eq.s32.totalorder %v280, 1
    %v285 = vsel %vm281, %v275, 0.0
    %v286 = vsel %vm282, %v274, 0.0
    %v287 = vsel %vm283, %v273, 0.0
    %v288 = vsel %vm284, %v276, 0.0
    %v289 = vlaneseq
    %v290 = vshrl.u32 %v289, 7
    %v291 = vsub.s32 5, %v290
    %v292 = vrot.slane %v118, %v291
    %v293 = vmul.f32 %v285, %v292
    %v294 = vmul.f32 %v286, %v292
    %v295 = vmul.f32 %v287, %v292
    %v296 = vmul.f32 %v288, %v292
    %v297 = vadd.f32 %v264, %v293
    %v298 = vadd.f32 %v265, %v294
    %v299 = vadd.f32 %v266, %v295
    %v300 = vadd.f32 %v267, %v296
    %v301 = vsel %vm110, 1, 0
    %v302 = vsel %vm111, 1, 0
    %v303 = vsel %vm112, 1, 0
    %v304 = vsel %vm113, 1, 0
    %vm305 = vcmp.eq.s32.totalorder %v301, 1
    %vm306 = vcmp.eq.s32.totalorder %v302, 1
    %vm307 = vcmp.eq.s32.totalorder %v303, 1
    %vm308 = vcmp.eq.s32.totalorder %v304, 1
    %v309 = vsel %vm305, %v131, 0.0
    %v310 = vsel %vm306, %v130, 0.0
    %v311 = vsel %vm307, %v129, 0.0
    %v312 = vsel %vm308, %v132, 0.0
    %v313 = vlaneseq
    %v314 = vshrl.u32 %v313, 7
    %v315 = vsub.s32 6, %v314
    %v316 = vrot.slane %v118, %v315
    %v317 = vmul.f32 %v309, %v316
    %v318 = vmul.f32 %v310, %v316
    %v319 = vmul.f32 %v311, %v316
    %v320 = vmul.f32 %v312, %v316
    %v321 = vadd.f32 %v297, %v317
    %v322 = vadd.f32 %v298, %v318
    %v323 = vadd.f32 %v299, %v319
    %v324 = vadd.f32 %v300, %v320
    %v325 = vsel %vm106, 1, 0
    %v326 = vsel %vm107, 1, 0
    %v327 = vsel %vm108, 1, 0
    %v328 = vsel %vm109, 1, 0
    %vm329 = vcmp.eq.s32.totalorder %v325, 1
    %vm330 = vcmp.eq.s32.totalorder %v326, 1
    %vm331 = vcmp.eq.s32.totalorder %v327, 1
    %vm332 = vcmp.eq.s32.totalorder %v328, 1
    %v333 = vsel %vm329, %v164, 0.0
    %v334 = vsel %vm330, %v163, 0.0
    %v335 = vsel %vm331, %v162, 0.0
    %v336 = vsel %vm332, %v165, 0.0
    %v337 = vlaneseq
    %v338 = vshrl.u32 %v337, 7
    %v339 = vsub.s32 7, %v338
    %v340 = vrot.slane %v118, %v339
    %v341 = vmul.f32 %v333, %v340
    %v342 = vmul.f32 %v334, %v340
    %v343 = vmul.f32 %v335, %v340
    %v344 = vmul.f32 %v336, %v340
    %v345 = vadd.f32 %v321, %v341
    %v346 = vadd.f32 %v322, %v342
    %v347 = vadd.f32 %v323, %v343
    %v348 = vadd.f32 %v324, %v344
    %v349 = vsel %vm114, 1, 0
    %v350 = vsel %vm115, 1, 0
    %v351 = vsel %vm116, 1, 0
    %v352 = vsel %vm117, 1, 0
    %vm353 = vcmp.eq.s32.totalorder %v349, 1
    %vm354 = vcmp.eq.s32.totalorder %v350, 1
    %vm355 = vcmp.eq.s32.totalorder %v351, 1
    %vm356 = vcmp.eq.s32.totalorder %v352, 1
    %v357 = vsel %vm353, %v197, 0.0
    %v358 = vsel %vm354, %v196, 0.0
    %v359 = vsel %vm355, %v195, 0.0
    %v360 = vsel %vm356, %v198, 0.0
    %v361 = vlaneseq
    %v362 = vshrl.u32 %v361, 7
    %v363 = vsub.s32 0, %v362
    %v364 = vrot.slane %v119, %v363
    %v365 = vmul.f32 %v357, %v364
    %v366 = vmul.f32 %v358, %v364
    %v367 = vmul.f32 %v359, %v364
    %v368 = vmul.f32 %v360, %v364
    %v369 = vadd.f32 %v345, %v365
    %v370 = vadd.f32 %v346, %v366
    %v371 = vadd.f32 %v347, %v367
    %v372 = vadd.f32 %v348, %v368
    %v373 = vmul.f32 %v369, 0.5
    %v374 = vmul.f32 %v370, 0.5
    %v375 = vmul.f32 %v371, 0.5
    %v376 = vmul.f32 %v372, 0.5
    %v377 = vmul.f32 %v369, 0.70710677
    %v378 = vmul.f32 %v370, 0.70710677
    %v379 = vmul.f32 %v371, 0.70710677
    %v380 = vmul.f32 %v372, 0.70710677
    %v381 = verf.f32.pop %v377
    %v382 = verf.f32.pop %v378
    %v383 = verf.f32.pop %v379
    %v384 = verf.f32.pop %v380
    %v385 = vadd.f32 %v381, 1.0
    %v386 = vadd.f32 %v382, 1.0
    %v387 = vadd.f32 %v383, 1.0
    %v388 = vadd.f32 %v384, 1.0
    %v389 = vmul.f32 %v373, %v385
    %v390 = vmul.f32 %v374, %v386
    %v391 = vmul.f32 %v375, %v387
    %v392 = vmul.f32 %v376, %v388
    %v393 = vld [vmem:[%s2] sm:$0xff]
    %v394 = vld [vmem:[%s2 + $0x8] sm:$0xff]
    %v395 = vlaneseq
    %v396 = vshrl.u32 %v395, 7
    %v397 = vsub.s32 1, %v396
    %v398 = vrot.slane %v394, %v397
    %v399 = vrot.slane %v389, 3
    %v400 = vrot.slane %v390, 3
    %v401 = vrot.slane %v391, 3
    %v402 = vrot.slane %v392, 3
    %v403 = vsel %vm128, %v401, %v402
    %v404 = vsel %vm128, %v400, %v401
    %v405 = vsel %vm128, %v399, %v400
    %v406 = vsel %vm128, %v402, %v399
    %v407 = vsel %vm137, %v406, 0.0
    %v408 = vsel %vm138, %v405, 0.0
    %v409 = vsel %vm139, %v404, 0.0
    %v410 = vsel %vm140, %v403, 0.0
    %v411 = vlaneseq
    %v412 = vshrl.u32 %v411, 7
    %v413 = vsub.s32 0, %v412
    %v414 = vrot.slane %v393, %v413
    %v415 = vmul.f32 %v407, %v414
    %v416 = vmul.f32 %v408, %v414
    %v417 = vmul.f32 %v409, %v414
    %v418 = vmul.f32 %v410, %v414
    %v419 = vadd.f32 %v398, %v415
    %v420 = vadd.f32 %v398, %v416
    %v421 = vadd.f32 %v398, %v417
    %v422 = vadd.f32 %v398, %v418
    %v423 = vrot.slane %v389, 4
    %v424 = vrot.slane %v390, 4
    %v425 = vrot.slane %v391, 4
    %v426 = vrot.slane %v392, 4
    %v427 = vsel %vm161, %v425, %v426
    %v428 = vsel %vm161, %v424, %v425
    %v429 = vsel %vm161, %v423, %v424
    %v430 = vsel %vm161, %v426, %v423
    %v431 = vsel %vm170, %v430, 0.0
    %v432 = vsel %vm171, %v429, 0.0
    %v433 = vsel %vm172, %v428, 0.0
    %v434 = vsel %vm173, %v427, 0.0
    %v435 = vlaneseq
    %v436 = vshrl.u32 %v435, 7
    %v437 = vsub.s32 1, %v436
    %v438 = vrot.slane %v393, %v437
    %v439 = vmul.f32 %v431, %v438
    %v440 = vmul.f32 %v432, %v438
    %v441 = vmul.f32 %v433, %v438
    %v442 = vmul.f32 %v434, %v438
    %v443 = vadd.f32 %v419, %v439
    %v444 = vadd.f32 %v420, %v440
    %v445 = vadd.f32 %v421, %v441
    %v446 = vadd.f32 %v422, %v442
    %v447 = vrot.slane %v389, 5
    %v448 = vrot.slane %v390, 5
    %v449 = vrot.slane %v391, 5
    %v450 = vrot.slane %v392, 5
    %v451 = vsel %vm194, %v449, %v450
    %v452 = vsel %vm194, %v448, %v449
    %v453 = vsel %vm194, %v447, %v448
    %v454 = vsel %vm194, %v450, %v447
    %v455 = vsel %vm203, %v454, 0.0
    %v456 = vsel %vm204, %v453, 0.0
    %v457 = vsel %vm205, %v452, 0.0
    %v458 = vsel %vm206, %v451, 0.0
    %v459 = vlaneseq
    %v460 = vshrl.u32 %v459, 7
    %v461 = vsub.s32 2, %v460
    %v462 = vrot.slane %v393, %v461
    %v463 = vmul.f32 %v455, %v462
    %v464 = vmul.f32 %v456, %v462
    %v465 = vmul.f32 %v457, %v462
    %v466 = vmul.f32 %v458, %v462
    %v467 = vadd.f32 %v443, %v463
    %v468 = vadd.f32 %v444, %v464
    %v469 = vadd.f32 %v445, %v465
    %v470 = vadd.f32 %v446, %v466
    %v471 = vrot.slane %v389, 7
    %v472 = vrot.slane %v390, 7
    %v473 = vrot.slane %v391, 7
    %v474 = vrot.slane %v392, 7
    %v475 = vsel %vm227, %v473, %v474
    %v476 = vsel %vm227, %v472, %v473
    %v477 = vsel %vm227, %v471, %v472
    %v478 = vsel %vm227, %v474, %v471
    %v479 = vsel %vm236, %v478, 0.0
    %v480 = vsel %vm237, %v477, 0.0
    %v481 = vsel %vm238, %v476, 0.0
    %v482 = vsel %vm239, %v475, 0.0
    %v483 = vlaneseq
    %v484 = vshrl.u32 %v483, 7
    %v485 = vsub.s32 3, %v484
    %v486 = vrot.slane %v393, %v485
    %v487 = vmul.f32 %v479, %v486
    %v488 = vmul.f32 %v480, %v486
    %v489 = vmul.f32 %v481, %v486
    %v490 = vmul.f32 %v482, %v486
    %v491 = vadd.f32 %v467, %v487
    %v492 = vadd.f32 %v468, %v488
    %v493 = vadd.f32 %v469, %v489
    %v494 = vadd.f32 %v470, %v490
    %v495 = vlaneseq
    %v496 = vshrl.u32 %v495, 7
    %v497 = vsub.s32 4, %v496
    %v498 = vrot.slane %v393, %v497
    %v499 = vmul.f32 %v389, %v498
    %v500 = vmul.f32 %v390, %v498
    %v501 = vmul.f32 %v391, %v498
    %v502 = vmul.f32 %v392, %v498
    %v503 = vadd.f32 %v491, %v499
    %v504 = vadd.f32 %v492, %v500
    %v505 = vadd.f32 %v493, %v501
    %v506 = vadd.f32 %v494, %v502
    %v507 = vrot.slane %v389, 1
    %v508 = vrot.slane %v390, 1
    %v509 = vrot.slane %v391, 1
    %v510 = vrot.slane %v392, 1
    %v511 = vsel %vm272, %v509, %v510
    %v512 = vsel %vm272, %v508, %v509
    %v513 = vsel %vm272, %v507, %v508
    %v514 = vsel %vm272, %v510, %v507
    %v515 = vsel %vm281, %v513, 0.0
    %v516 = vsel %vm282, %v512, 0.0
    %v517 = vsel %vm283, %v511, 0.0
    %v518 = vsel %vm284, %v514, 0.0
    %v519 = vlaneseq
    %v520 = vshrl.u32 %v519, 7
    %v521 = vsub.s32 5, %v520
    %v522 = vrot.slane %v393, %v521
    %v523 = vmul.f32 %v515, %v522
    %v524 = vmul.f32 %v516, %v522
    %v525 = vmul.f32 %v517, %v522
    %v526 = vmul.f32 %v518, %v522
    %v527 = vadd.f32 %v503, %v523
    %v528 = vadd.f32 %v504, %v524
    %v529 = vadd.f32 %v505, %v525
    %v530 = vadd.f32 %v506, %v526
    %v531 = vsel %vm305, %v405, 0.0
    %v532 = vsel %vm306, %v404, 0.0
    %v533 = vsel %vm307, %v403, 0.0
    %v534 = vsel %vm308, %v406, 0.0
    %v535 = vlaneseq
    %v536 = vshrl.u32 %v535, 7
    %v537 = vsub.s32 6, %v536
    %v538 = vrot.slane %v393, %v537
    %v539 = vmul.f32 %v531, %v538
    %v540 = vmul.f32 %v532, %v538
    %v541 = vmul.f32 %v533, %v538
    %v542 = vmul.f32 %v534, %v538
    %v543 = vadd.f32 %v527, %v539
    %v544 = vadd.f32 %v528, %v540
    %v545 = vadd.f32 %v529, %v541
    %v546 = vadd.f32 %v530, %v542
    %v547 = vsel %vm329, %v429, 0.0
    %v548 = vsel %vm330, %v428, 0.0
    %v549 = vsel %vm331, %v427, 0.0
    %v550 = vsel %vm332, %v430, 0.0
    %v551 = vlaneseq
    %v552 = vshrl.u32 %v551, 7
    %v553 = vsub.s32 7, %v552
    %v554 = vrot.slane %v393, %v553
    %v555 = vmul.f32 %v547, %v554
    %v556 = vmul.f32 %v548, %v554
    %v557 = vmul.f32 %v549, %v554
    %v558 = vmul.f32 %v550, %v554
    %v559 = vadd.f32 %v543, %v555
    %v560 = vadd.f32 %v544, %v556
    %v561 = vadd.f32 %v545, %v557
    %v562 = vadd.f32 %v546, %v558
    %v563 = vsel %vm353, %v453, 0.0
    %v564 = vsel %vm354, %v452, 0.0
    %v565 = vsel %vm355, %v451, 0.0
    %v566 = vsel %vm356, %v454, 0.0
    %v567 = vlaneseq
    %v568 = vshrl.u32 %v567, 7
    %v569 = vsub.s32 0, %v568
    %v570 = vrot.slane %v394, %v569
    %v571 = vmul.f32 %v563, %v570
    %v572 = vmul.f32 %v564, %v570
    %v573 = vmul.f32 %v565, %v570
    %v574 = vmul.f32 %v566, %v570
    %v575 = vadd.f32 %v559, %v571
    %v576 = vadd.f32 %v560, %v572
    %v577 = vadd.f32 %v561, %v573
    %v578 = vadd.f32 %v562, %v574
    %v579 = vmul.f32 %v575, 0.5
    %v580 = vmul.f32 %v576, 0.5
    %v581 = vmul.f32 %v577, 0.5
    %v582 = vmul.f32 %v578, 0.5
    %v583 = vmul.f32 %v575, 0.70710677
    %v584 = vmul.f32 %v576, 0.70710677
    %v585 = vmul.f32 %v577, 0.70710677
    %v586 = vmul.f32 %v578, 0.70710677
    %v587 = verf.f32.pop %v583
    %v588 = verf.f32.pop %v584
    %v589 = verf.f32.pop %v585
    %v590 = verf.f32.pop %v586
    %v591 = vadd.f32 %v587, 1.0
    %v592 = vadd.f32 %v588, 1.0
    %v593 = vadd.f32 %v589, 1.0
    %v594 = vadd.f32 %v590, 1.0
    %v595 = vmul.f32 %v579, %v591
    %v596 = vmul.f32 %v580, %v592
    %v597 = vmul.f32 %v581, %v593
    %v598 = vmul.f32 %v582, %v594
    %v599 = vadd.f32 %v65, %v595
    %v600 = vadd.f32 %v66, %v596
    %v601 = vadd.f32 %v67, %v597
    %v602 = vadd.f32 %v68, %v598
    %v603 = vmul.f32 %v599, 0.5
    %v604 = vmul.f32 %v600, 0.5
    %v605 = vmul.f32 %v601, 0.5
    %v606 = vmul.f32 %v602, 0.5
    %v607 = vld [vmem:[%s3] sm:$0xff]
    %v608 = vld [vmem:[%s3 + $0x8] sm:$0xff]
    %v609 = vadd.f32 %v603, %v607
    %v610 = vadd.f32 %v604, %v608
    %v611 = vadd.f32 %v605, %v607
    %v612 = vadd.f32 %v606, %v608
    %613 = vst [vmem:[#allocation3] sm:$0xff] %v609
    %614 = vst [vmem:[#allocation3 + $0x8] sm:$0xff] %v610
    %615 = vst [vmem:[#allocation3 + $0x10] sm:$0xff] %v611
    %616 = vst [vmem:[#allocation3 + $0x18] sm:$0xff] %v612
    // Predicated region
    $region18: #{upsampling_hybrid.1} parent=1 // pred_check
      _
    $region19: #{upsampling_hybrid.1} parent=1 // pred_check_branch
      %618 = sbr.rel (0) target = $region21
    $region20: #{upsampling_hybrid.1} parent=1 // pred_region
      %s620 = ssub.s32 512, 512
      %621 = vsyncadd [#allocation4], %s620
      %s622 = sshll.u32 [#allocation3], 4
      %s623 = int_to_ptr.vmem [resolvable:$true] %s622
      %628 = dma.vmem_to_hbm [thread:$0]  %s623, 512, %s4, [#allocation4], 128, 128, 8
    $region21: #{upsampling_hybrid.1} parent=1 // pred_fallthru
      _
    // Predicated region
    $region22: #{upsampling_hybrid.1} parent=1 // pred_check
      _
    $region23: #{upsampling_hybrid.1} parent=1 // pred_check_branch
      %630 = sbr.rel (0) target = $region25
    $region24: #{upsampling_hybrid.1} parent=1 // pred_region
      %631 = dma.done [#allocation4], 512
    $region25: #{upsampling_hybrid.1} parent=1 // pred_fallthru
      _
    %632 = vsyncpa [#allocation4], 1

</llo_original>
